<compile_context>
chip_gen: v6e
topology: v6e:2x2x1
jax: 0.10.0
libtpu: 0.0.40
codegen_flags: <defaults>
</compile_context>

<pallas_src>
import functools

import jax
import jax.numpy as jnp
from jax import lax
from jax.experimental import pallas as pl
from jax.experimental.pallas import tpu as pltpu


def _conv_bn_relu_kernel(x_ref, w_ref, b_ref, o_ref, lhs_ref, *, padding, kh_taps):
    """One grid step = one whole image.

    x_ref:   (1, H, WCp)            lane-dense image (W*Cin padded to WCp lanes)
    w_ref:   (KH*WCp, Wo*Cout)      row+width Toeplitz weight, BN scale folded in, resident
    b_ref:   (1, Wo*Cout)           folded BN bias, pre-tiled over Wo, f32
    o_ref:   (1, Ho, Wo*Cout)       full output image, lane-dense minor dim
    lhs_ref: (Ho, KH*WCp)           VMEM scratch: row-Toeplitz LHS for the single matmul
    """
    H = x_ref.shape[1]
    WCp = x_ref.shape[2]
    Ho = o_ref.shape[1]

    # Single full-lane load of the image; every row is reused by up to KH slabs.
    x = x_ref[0]                                        # (H, WCp)

    # Build the row-Toeplitz LHS: slab kh holds padded-input rows [kh, kh+Ho) at lane
    # offset kh*WCp.  All slab stores are full 128-lane-aligned (WCp is a multiple of
    # 128), so this is pure unmasked vst traffic, done ONCE per image.
    for kh in range(kh_taps):                            # static unroll (KH is tiny)
        col = kh * WCp
        lo = kh - padding                                # first unpadded input row of slab
        src_start = max(lo, 0)
        src_stop = min(lo + Ho, H)
        n_valid = max(src_stop - src_start, 0)
        dst_start = src_start - lo
        if dst_start > 0:                                # top zero rows (row padding)
            lhs_ref[0:dst_start, col:col + WCp] = jnp.zeros(
                (dst_start, WCp), lhs_ref.dtype)
        if dst_start + n_valid < Ho:                     # bottom zero rows (row padding)
            lhs_ref[dst_start + n_valid:Ho, col:col + WCp] = jnp.zeros(
                (Ho - dst_start - n_valid, WCp), lhs_ref.dtype)
        if n_valid > 0:
            lhs_ref[dst_start:dst_start + n_valid, col:col + WCp] = x[src_start:src_stop, :]

    # One deep, lane-dense MXU matmul for the whole image (f32 accumulation).
    acc = jnp.dot(lhs_ref[...], w_ref[...], preferred_element_type=jnp.float32)

    # Epilogue: folded BN bias + ReLU, then one unmasked full-lane store.
    o_ref[0] = jnp.maximum(acc + b_ref[...], 0.0).astype(o_ref.dtype)


def prepare_basic_conv_params(weight_oihw, gamma, beta, running_mean, running_var, *,
                              W, padding=0, eps=1e-5, compute_dtype=jnp.bfloat16):
    """Build the fused-kernel parameters ONCE (parameter-load time, not per forward).

    Returns:
      w_big:     (KH*WCp, Wo*Cout)  Toeplitz weight (BN scale, width taps, width padding
                                    and lane padding all folded in), compute_dtype.
      bias_lane: (1, Wo*Cout)       folded BN bias pre-tiled to the output lane layout, f32.
    """
    Cout, Cin, KH, KW = weight_oihw.shape
    Wo = W + 2 * padding - KW + 1
    assert Wo > 0

    inv_std = 1.0 / jnp.sqrt(running_var.astype(jnp.float32) + eps)
    bn_scale = gamma.astype(jnp.float32) * inv_std
    bn_bias = beta.astype(jnp.float32) - running_mean.astype(jnp.float32) * bn_scale

    # OIHW -> HWIO, fold BN scale into the conv weights.
    w_hwio = jnp.transpose(weight_oihw, (2, 3, 1, 0)).astype(jnp.float32)     # (KH,KW,Cin,Cout)
    w_f32 = w_hwio * bn_scale                                                 # scale per Cout

    # Width-Toeplitz: fold the KW taps and the width zero-padding into one
    # (W*Cin, Wo*Cout) matrix per kh tap (lane order: w*Cin+c -> wo*Cout+co).
    kw_idx = jnp.arange(W)[:, None] - jnp.arange(Wo)[None, :] + padding       # (W, Wo)
    valid = (kw_idx >= 0) & (kw_idx < KW)
    kw_cl = jnp.clip(kw_idx, 0, KW - 1)
    toep = w_f32[:, kw_cl, :, :]                                              # (KH,W,Wo,Cin,Cout)
    toep = toep * valid[None, :, :, None, None].astype(jnp.float32)
    toep = jnp.transpose(toep, (0, 1, 3, 2, 4)).reshape(KH, W * Cin, Wo * Cout)

    # Pad the per-tap K dim from W*Cin up to a full lane multiple (128) so the in-kernel
    # LHS slab stores are 128-lane-aligned and each slab exactly fills a 128-deep MXU pass.
    WCp = ((W * Cin + 127) // 128) * 128
    if WCp > W * Cin:
        toep = jnp.pad(toep, ((0, 0), (0, WCp - W * Cin), (0, 0)))
    w_big = toep.reshape(KH * WCp, Wo * Cout).astype(compute_dtype)

    # Resident-weight gate: the ~Wo inflation must stay well inside scoped VMEM (v7x: 64 MiB
    # physical / ~32 MiB scoped).  TODO(synk): fall back to per-tap (K=Cin, N=Cout) tiling
    # for large W / large channel counts instead of raising.
    w_bytes = KH * WCp * Wo * Cout * jnp.dtype(compute_dtype).itemsize
    if w_bytes > 12 * 1024 * 1024:
        raise NotImplementedError(
            "Toeplitz weight too large for resident VMEM; use per-tap tiling instead")

    bias_lane = jnp.tile(bn_bias, Wo).reshape(1, Wo * Cout)                   # lane = wo*Cout+co
    return w_big, bias_lane


def basic_conv_forward(x_nchw, w_big, bias_lane, *, KH, KW, stride=1, padding=0,
                       compute_dtype=jnp.bfloat16):
    """Per-call forward: boundary reshape + one pallas_call.  NCHW in / NCHW out."""
    assert stride == 1, "TODO(synk): only stride=1 (BasicConv default) is implemented"
    N, Cin, H, W = x_nchw.shape
    Ho = H + 2 * padding - KH + 1
    Wo = W + 2 * padding - KW + 1
    assert Ho > 0 and Wo > 0
    WCp = w_big.shape[0] // KH
    WoCout = w_big.shape[1]
    Cout = WoCout // Wo
    assert WCp >= W * Cin and WoCout == Wo * Cout

    # NCHW -> lane-dense (N, H, WCp).  These boundary transposes exist only to match the
    # PyTorch module's layout; inside a full NHWC network they should be dropped.
    x_lane = jnp.transpose(x_nchw, (0, 2, 3, 1)).reshape(N, H, W * Cin)
    if WCp > W * Cin:
        x_lane = jnp.pad(x_lane, ((0, 0), (0, 0), (0, WCp - W * Cin)))
    x_lane = x_lane.astype(compute_dtype)

    # VMEM budget derived from actual buffer sizes (double-buffered I/O) + headroom.
    itemsize = jnp.dtype(compute_dtype).itemsize
    out_itemsize = jnp.dtype(x_nchw.dtype).itemsize
    buf_bytes = (2 * H * WCp * itemsize                # x block
                 + 2 * KH * WCp * WoCout * itemsize    # resident weight (counted x2, safe)
                 + 2 * WoCout * 4                      # bias
                 + 2 * Ho * WoCout * out_itemsize      # output block
                 + Ho * KH * WCp * itemsize)           # LHS scratch
    vmem_limit = int(min(100 * 1024 * 1024, max(8 * 1024 * 1024, 4 * buf_bytes)))

    kernel = functools.partial(_conv_bn_relu_kernel, padding=padding, kh_taps=KH)

    out = pl.pallas_call(
        kernel,
        # TODO(synk): emit bf16 output directly when the downstream net is bf16
        # (Ho=16 already satisfies the (16,128) bf16 tile minimum).
        out_shape=jax.ShapeDtypeStruct((N, Ho, WoCout), x_nchw.dtype),
        grid_spec=pltpu.PrefetchScalarGridSpec(
            num_scalar_prefetch=0,
            grid=(N,),                                  # one step per image
            in_specs=[
                pl.BlockSpec((1, H, WCp), lambda n: (n, 0, 0)),
                # Weights / bias: constant index_map -> DMA'd once, resident.
                pl.BlockSpec((KH * WCp, WoCout), lambda n: (0, 0)),
                pl.BlockSpec((1, WoCout), lambda n: (0, 0)),
            ],
            out_specs=pl.BlockSpec((1, Ho, WoCout), lambda n: (n, 0, 0)),
            scratch_shapes=[pltpu.VMEM((Ho, KH * WCp), compute_dtype)],
        ),
        compiler_params=pltpu.CompilerParams(
            dimension_semantics=("parallel",),          # v7x: one image per TensorCore
            vmem_limit_bytes=vmem_limit,
        ),
    )(x_lane, w_big, bias_lane)

    # Lane-dense (N, Ho, Wo*Cout) -> NCHW boundary layout.
    return jnp.transpose(out.reshape(N, Ho, Wo, Cout), (0, 3, 1, 2))


def basic_conv_module(x_nchw, weight_oihw, gamma, beta, running_mean, running_var, *,
                      stride=1, padding=0, eps=1e-5, compute_dtype=jnp.bfloat16):
    """Convenience wrapper mirroring BasicConv.forward (bn=True, relu=True, bias=False,
    eval mode).  For inference, call prepare_basic_conv_params once and reuse the result
    with basic_conv_forward instead of calling this per step."""
    Cout, Cin, KH, KW = weight_oihw.shape
    W = x_nchw.shape[3]
    w_big, bias_lane = prepare_basic_conv_params(
        weight_oihw, gamma, beta, running_mean, running_var,
        W=W, padding=padding, eps=eps, compute_dtype=compute_dtype)
    return basic_conv_forward(x_nchw, w_big, bias_lane, KH=KH, KW=KW,
                              stride=stride, padding=padding, compute_dtype=compute_dtype)


def _reference(x_nchw, weight_oihw, gamma, beta, running_mean, running_var,
               *, stride=1, padding=0, eps=1e-5):
    y = lax.conv_general_dilated(
        x_nchw, weight_oihw,
        window_strides=(stride, stride),
        padding=((padding, padding), (padding, padding)),
        dimension_numbers=("NCHW", "OIHW", "NCHW"),
    )
    inv_std = 1.0 / jnp.sqrt(running_var + eps)
    scale = (gamma * inv_std)[None, :, None, None]
    bias = (beta - running_mean * gamma * inv_std)[None, :, None, None]
    return jnp.maximum(y * scale + bias, 0.0)


if __name__ == "__main__":
    # BasicConv(in_planes=4, out_planes=8, kernel_size=3, stride=1, padding=1), eval mode.
    N, Cin, H, W = 2, 4, 16, 16
    Cout, K, pad = 8, 3, 1

    key = jax.random.PRNGKey(0)
    k_x, k_w, k_g, k_b, k_m, k_v = jax.random.split(key, 6)

    x = jax.random.normal(k_x, (N, Cin, H, W), dtype=jnp.float32)
    weight = 0.1 * jax.random.normal(k_w, (Cout, Cin, K, K), dtype=jnp.float32)   # OIHW
    gamma = 1.0 + 0.1 * jax.random.normal(k_g, (Cout,), dtype=jnp.float32)
    beta = 0.1 * jax.random.normal(k_b, (Cout,), dtype=jnp.float32)
    running_mean = 0.1 * jax.random.normal(k_m, (Cout,), dtype=jnp.float32)
    running_var = jnp.abs(1.0 + 0.1 * jax.random.normal(k_v, (Cout,), dtype=jnp.float32))

    ref = _reference(x, weight, gamma, beta, running_mean, running_var,
                     stride=1, padding=pad)

    # --- f32-operand path (strict accuracy check) ------------------------------------
    # Parameter prep is hoisted out of the forward path (done once at load time).
    w_big_f32, bias_lane_f32 = prepare_basic_conv_params(
        weight, gamma, beta, running_mean, running_var,
        W=W, padding=pad, compute_dtype=jnp.float32)
    fwd_f32 = jax.jit(functools.partial(
        basic_conv_forward, KH=K, KW=K, stride=1, padding=pad, compute_dtype=jnp.float32))
    out_f32 = jax.block_until_ready(fwd_f32(x, w_big_f32, bias_lane_f32))
    assert out_f32.shape == (N, Cout, H, W)
    assert jnp.allclose(out_f32, ref, atol=1e-4, rtol=1e-4), "f32 kernel mismatch vs reference"

    # --- bf16-operand path (default; MXU peak on all chips, f32 accumulation) ---------
    w_big_bf16, bias_lane_bf16 = prepare_basic_conv_params(
        weight, gamma, beta, running_mean, running_var,
        W=W, padding=pad, compute_dtype=jnp.bfloat16)
    fwd_bf16 = jax.jit(functools.partial(
        basic_conv_forward, KH=K, KW=K, stride=1, padding=pad, compute_dtype=jnp.bfloat16))
    out_bf16 = jax.block_until_ready(fwd_bf16(x, w_big_bf16, bias_lane_bf16))
    assert out_bf16.shape == (N, Cout, H, W)
    assert jnp.allclose(out_bf16, ref, atol=5e-2, rtol=5e-2), "bf16 kernel mismatch vs reference"

    # Convenience (un-hoisted) wrapper still matches.
    out_mod = jax.block_until_ready(basic_conv_module(
        x, weight, gamma, beta, running_mean, running_var,
        stride=1, padding=pad, compute_dtype=jnp.float32))
    assert jnp.allclose(out_mod, ref, atol=1e-4, rtol=1e-4), "module wrapper mismatch"

    print("KERNEL_OK")
</pallas_src>

<mosaic_0001>
module attributes {stable_mosaic.version = 11 : i64} {
  func.func @_conv_bn_relu_kernel(%arg0: i32, %arg1: memref<1x16x128xf32, #tpu.memory_space<vmem>>, %arg2: memref<384x128xf32, #tpu.memory_space<vmem>>, %arg3: memref<1x128xf32, #tpu.memory_space<vmem>>, %arg4: memref<1x16x128xf32, #tpu.memory_space<vmem>>, %arg5: memref<16x384xf32, #tpu.memory_space<vmem>>) attributes {dimension_semantics = [#tpu.dimension_semantics<parallel>], iteration_bounds = array<i64: 2>, scalar_prefetch = 0 : i64, scratch_operands = 1 : i64, tpu.core_type = #tpu.core_type<tc>, window_params = [{transform_indices = @transform_0, window_bounds = array<i64: 1, 16, 128>}, {pipeline_mode = #tpu.pipeline_mode<synchronous>, transform_indices = @transform_1, window_bounds = array<i64: 384, 128>}, {pipeline_mode = #tpu.pipeline_mode<synchronous>, transform_indices = @transform_2, window_bounds = array<i64: 1, 128>}, {transform_indices = @transform_3, window_bounds = array<i64: 1, 16, 128>}]} {
    %c0 = arith.constant 0 : index
    %c0_0 = arith.constant 0 : index
    %c0_1 = arith.constant 0 : index
    %0 = vector.load %arg1[%c0, %c0_0, %c0_1] : memref<1x16x128xf32, #tpu.memory_space<vmem>>, vector<1x16x128xf32>
    %1 = vector.shape_cast %0 : vector<1x16x128xf32> to vector<16x128xf32>
    %cst = arith.constant 0.000000e+00 : f32
    %2 = vector.broadcast %cst : f32 to vector<1x128xf32>
    %c0_2 = arith.constant 0 : index
    %c0_3 = arith.constant 0 : index
    %3 = vector.load %arg5[%c0_2, %c0_3] : memref<16x384xf32, #tpu.memory_space<vmem>>, vector<1x128xf32>
    tpu.vector_store %arg5[%c0_2, %c0_3], %2 {strides = array<i32>} : memref<16x384xf32, #tpu.memory_space<vmem>>, vector<1x128xf32>,
    %4 = vector.extract_strided_slice %1 {offsets = [0, 0], sizes = [15, 128], strides = [1, 1]} : vector<16x128xf32> to vector<15x128xf32>
    %c1 = arith.constant 1 : index
    %c0_4 = arith.constant 0 : index
    %5 = vector.load %arg5[%c1, %c0_4] : memref<16x384xf32, #tpu.memory_space<vmem>>, vector<15x128xf32>
    tpu.vector_store %arg5[%c1, %c0_4], %4 {strides = array<i32>} : memref<16x384xf32, #tpu.memory_space<vmem>>, vector<15x128xf32>,
    %c0_5 = arith.constant 0 : index
    %c128 = arith.constant 128 : index
    %6 = vector.load %arg5[%c0_5, %c128] : memref<16x384xf32, #tpu.memory_space<vmem>>, vector<16x128xf32>
    tpu.vector_store %arg5[%c0_5, %c128], %1 {strides = array<i32>} : memref<16x384xf32, #tpu.memory_space<vmem>>, vector<16x128xf32>,
    %cst_6 = arith.constant 0.000000e+00 : f32
    %7 = vector.broadcast %cst_6 : f32 to vector<1x128xf32>
    %c15 = arith.constant 15 : index
    %c256 = arith.constant 256 : index
    %8 = vector.load %arg5[%c15, %c256] : memref<16x384xf32, #tpu.memory_space<vmem>>, vector<1x128xf32>
    tpu.vector_store %arg5[%c15, %c256], %7 {strides = array<i32>} : memref<16x384xf32, #tpu.memory_space<vmem>>, vector<1x128xf32>,
    %9 = vector.extract_strided_slice %1 {offsets = [1, 0], sizes = [15, 128], strides = [1, 1]} : vector<16x128xf32> to vector<15x128xf32>
    %c0_7 = arith.constant 0 : index
    %c256_8 = arith.constant 256 : index
    %10 = vector.load %arg5[%c0_7, %c256_8] : memref<16x384xf32, #tpu.memory_space<vmem>>, vector<15x128xf32>
    tpu.vector_store %arg5[%c0_7, %c256_8], %9 {strides = array<i32>} : memref<16x384xf32, #tpu.memory_space<vmem>>, vector<15x128xf32>,
    %c0_9 = arith.constant 0 : index
    %c0_10 = arith.constant 0 : index
    %11 = vector.load %arg5[%c0_9, %c0_10] : memref<16x384xf32, #tpu.memory_space<vmem>>, vector<16x384xf32>
    %c0_11 = arith.constant 0 : index
    %c0_12 = arith.constant 0 : index
    %12 = vector.load %arg2[%c0_11, %c0_12] : memref<384x128xf32, #tpu.memory_space<vmem>>, vector<384x128xf32>
    %cst_13 = arith.constant dense<0.000000e+00> : vector<16x128xf32>
    %13 = tpu.matmul %11, %12, %cst_13 {dimension_numbers = #tpu.dot_dimension_numbers<[1], [0], [0], [1], [0, 0, 1, 1], [], []>} : vector<16x384xf32>, vector<384x128xf32>, vector<16x128xf32> -> vector<16x128xf32>
    %c0_14 = arith.constant 0 : index
    %c0_15 = arith.constant 0 : index
    %14 = vector.load %arg3[%c0_14, %c0_15] : memref<1x128xf32, #tpu.memory_space<vmem>>, vector<1x128xf32>
    %15 = vector.broadcast %14 : vector<1x128xf32> to vector<16x128xf32>
    %16 = arith.addf %13, %15 : vector<16x128xf32>
    %cst_16 = arith.constant 0.000000e+00 : f32
    %17 = vector.broadcast %cst_16 : f32 to vector<16x128xf32>
    %18 = arith.maximumf %16, %17 : vector<16x128xf32>
    %c0_17 = arith.constant 0 : index
    %c0_18 = arith.constant 0 : index
    %c0_19 = arith.constant 0 : index
    %19 = vector.load %arg4[%c0_17, %c0_18, %c0_19] : memref<1x16x128xf32, #tpu.memory_space<vmem>>, vector<1x16x128xf32>
    %20 = vector.shape_cast %19 : vector<1x16x128xf32> to vector<16x128xf32>
    %21 = vector.shape_cast %18 : vector<16x128xf32> to vector<1x16x128xf32>
    tpu.vector_store %arg4[%c0_17, %c0_18, %c0_19], %21 {strides = array<i32>} : memref<1x16x128xf32, #tpu.memory_space<vmem>>, vector<1x16x128xf32>,
    return
  }
  func.func @transform_0(%arg0: i32) -> (i32, i32, i32) {
    %c0_i32 = arith.constant 0 : i32
    %c0_i32_0 = arith.constant 0 : i32
    %c0_i32_1 = arith.constant 0 : i32
    return %arg0, %c0_i32, %c0_i32_0 : i32, i32, i32
  }
  func.func @transform_1(%arg0: i32) -> (i32, i32) {
    %c0_i32 = arith.constant 0 : i32
    %c0_i32_0 = arith.constant 0 : i32
    %c0_i32_1 = arith.constant 0 : i32
    return %c0_i32, %c0_i32_0 : i32, i32
  }
  func.func @transform_2(%arg0: i32) -> (i32, i32) {
    %c0_i32 = arith.constant 0 : i32
    %c0_i32_0 = arith.constant 0 : i32
    %c0_i32_1 = arith.constant 0 : i32
    return %c0_i32, %c0_i32_0 : i32, i32
  }
  func.func @transform_3(%arg0: i32) -> (i32, i32, i32) {
    %c0_i32 = arith.constant 0 : i32
    %c0_i32_0 = arith.constant 0 : i32
    %c0_i32_1 = arith.constant 0 : i32
    return %arg0, %c0_i32, %c0_i32_0 : i32, i32, i32
  }
}

</mosaic_0001>

<llo_original>
// kernel: basic_conv_forward.1
$region0: #{basic_conv_forward.1}
  #allocation0 [shape = 'u32[]', space=smem, size = 0x4, offset = 0x4, fixed_abs, tag = 'smem constant byte address 0x4 - core index']
  #allocation1 [shape = 'u32[144,128]{1,0:T(1,128)}', space=vmem, size = 0x12000, scoped, tag = 'internal scratch']
  #allocation2 [shape = 'f32[16,384]{1,0:T(8,128)}', space=vmem, size = 0x6000, scoped, tag = 'scratch operand']
  %s0 = inlined_call_operand.vmem [shape: f32[2,16,128], index: 0, kind: input, shape index: {}]
  %s1 = inlined_call_operand.vmem [shape: f32[384,128], index: 1, kind: input, shape index: {}]
  %s2 = inlined_call_operand.vmem [shape: f32[1,128], index: 2, kind: input, shape index: {}]
  %s3 = inlined_call_operand.vmem [shape: f32[2,16,128], index: 3, kind: output, shape index: {}]
  %s4 = sld [smem:[#allocation0]]
  $region45: #{basic_conv_forward.1} parent=0
    _
  %s6 = ssub.s32 1, %s4
  %s7 = scalar_select 0, %s6, %s4
  loop: start=0, step=1, limit=4
  $region2: #{basic_conv_forward.1} parent=0 // loop_pre_header
    _
  $region3: #{basic_conv_forward.1} parent=0 // loop_header
    %s9 = sphi 0, %s13
    %p10 = scmp.ge.s32.totalorder %s9, 4
    %s19 = sphi 0, %s21
    %s22 = sphi 0, %s19
    %s23 = sphi 0, %s22
    %s39 = sphi 0, %s23
    %s43 = sphi 0, %s43
    %s45 = sphi 0, %s43
    %s46 = sphi 0, %s45
    %s60 = sphi 0, %s46
    %s64 = sphi 0, %s64
    %s66 = sphi 0, %s64
    %s67 = sphi 0, %s66
    %s81 = sphi 0, %s67
    %s87 = sphi 0, %s89
    %s90 = sphi 0, %s87
    %s91 = sphi 0, %s90
    %s107 = sphi 0, %s91
  $region4: #{basic_conv_forward.1} parent=0 // loop_header_branch
    %12 = sbr.rel (%p10) target = $region8
  $region5: #{basic_conv_forward.1} parent=0 // loop_body
    %s14 = ssub.s32 %s9, 1
    %s15 = ssub.s32 %s9, 2
    %s16 = sadd.s32 %s9, 1
    %s17 = ssub.s32 %s9, %s16
    %p18 = scmp.eq.s32.totalorder %s17, 0
    %s20 = sadd.s32 %s19, 1
    %s21 = scalar_select %p18, %s19, %s20
    %p24 = pneg %p18
    %p25 = scmp.eq.s32.totalorder %s9, 1
    %p26 = por %p24, %p25
    %p27 = scmp.ne.s32.totalorder %s19, %s22
    %p28 = scmp.eq.s32.totalorder %s9, 0
    %p29 = por %p27, %p28
    %p30 = scmp.ne.s32.totalorder %s19, %s22
    %p31 = scmp.eq.s32.totalorder %s14, 1
    %p32 = por %p30, %p31
    %p33 = scmp.ne.s32.totalorder %s22, %s23
    %p34 = scmp.eq.s32.totalorder %s14, 0
    %p35 = por %p33, %p34
    %p36 = scmp.ne.s32.totalorder %s22, %s23
    %p37 = scmp.eq.s32.totalorder %s15, 1
    %p38 = por %p36, %p37
    %p40 = scmp.ne.s32.totalorder %s23, %s39
    %p41 = scmp.eq.s32.totalorder %s15, 0
    %p42 = por %p40, %p41
    %s44 = sadd.s32 %s43, 1
    %p47 = scmp.eq.s32.totalorder %s9, 1
    %p48 = scmp.ne.s32.totalorder %s43, %s45
    %p49 = scmp.eq.s32.totalorder %s9, 0
    %p50 = por %p48, %p49
    %p51 = scmp.ne.s32.totalorder %s43, %s45
    %p52 = scmp.eq.s32.totalorder %s14, 1
    %p53 = por %p51, %p52
    %p54 = scmp.ne.s32.totalorder %s45, %s46
    %p55 = scmp.eq.s32.totalorder %s14, 0
    %p56 = por %p54, %p55
    %p57 = scmp.ne.s32.totalorder %s45, %s46
    %p58 = scmp.eq.s32.totalorder %s15, 1
    %p59 = por %p57, %p58
    %p61 = scmp.ne.s32.totalorder %s46, %s60
    %p62 = scmp.eq.s32.totalorder %s15, 0
    %p63 = por %p61, %p62
    %s65 = sadd.s32 %s64, 1
    %p68 = scmp.eq.s32.totalorder %s9, 1
    %p69 = scmp.ne.s32.totalorder %s64, %s66
    %p70 = scmp.eq.s32.totalorder %s9, 0
    %p71 = por %p69, %p70
    %p72 = scmp.ne.s32.totalorder %s64, %s66
    %p73 = scmp.eq.s32.totalorder %s14, 1
    %p74 = por %p72, %p73
    %p75 = scmp.ne.s32.totalorder %s66, %s67
    %p76 = scmp.eq.s32.totalorder %s14, 0
    %p77 = por %p75, %p76
    %p78 = scmp.ne.s32.totalorder %s66, %s67
    %p79 = scmp.eq.s32.totalorder %s15, 1
    %p80 = por %p78, %p79
    %p82 = scmp.ne.s32.totalorder %s67, %s81
    %p83 = scmp.eq.s32.totalorder %s15, 0
    %p84 = por %p82, %p83
    %s85 = ssub.s32 %s9, %s16
    %p86 = scmp.eq.s32.totalorder %s85, 0
    %s88 = sadd.s32 %s87, 1
    %s89 = scalar_select %p86, %s87, %s88
    %p92 = pneg %p86
    %p93 = scmp.eq.s32.totalorder %s9, 1
    %p94 = por %p92, %p93
    %p95 = scmp.ne.s32.totalorder %s87, %s90
    %p96 = scmp.eq.s32.totalorder %s9, 0
    %p97 = por %p95, %p96
    %p98 = scmp.ne.s32.totalorder %s87, %s90
    %p99 = scmp.eq.s32.totalorder %s14, 1
    %p100 = por %p98, %p99
    %p101 = scmp.ne.s32.totalorder %s90, %s91
    %p102 = scmp.eq.s32.totalorder %s14, 0
    %p103 = por %p101, %p102
    %p104 = scmp.ne.s32.totalorder %s90, %s91
    %p105 = scmp.eq.s32.totalorder %s15, 1
    %p106 = por %p104, %p105
    %p108 = scmp.ne.s32.totalorder %s91, %s107
    %p109 = scmp.eq.s32.totalorder %s15, 0
    %p110 = por %p108, %p109
    %p111 = scmp.le.s32.totalorder 1, %s9
    %p112 = scmp.lt.s32.totalorder %s9, 3
    %p113 = pnand %p111, %p112
    %p114 = pneg %p113
    // Predicated region
    $region9: #{basic_conv_forward.1} parent=5 // pred_check
      _
    $region10: #{basic_conv_forward.1} parent=5 // pred_check_branch
      %116 = sbr.rel (%p113) target = $region12
    $region11: #{basic_conv_forward.1} parent=5 // pred_region
      %s117 = ssub.s32 %s9, 1
      // Predicated region
      $region13: #{basic_conv_forward.1} parent=11 // pred_check
        %p118 = pneg %p56
      $region14: #{basic_conv_forward.1} parent=11 // pred_check_branch
        %120 = sbr.rel (%p118) target = $region16
      $region15: #{basic_conv_forward.1} parent=11 // pred_region
        _
      $region16: #{basic_conv_forward.1} parent=11 // pred_fallthru
        _
      // Predicated region
      $region17: #{basic_conv_forward.1} parent=11 // pred_check
        %p121 = pneg %p77
      $region18: #{basic_conv_forward.1} parent=11 // pred_check_branch
        %123 = sbr.rel (%p121) target = $region20
      $region19: #{basic_conv_forward.1} parent=11 // pred_region
        _
      $region20: #{basic_conv_forward.1} parent=11 // pred_fallthru
        _
    $region12: #{basic_conv_forward.1} parent=5 // pred_fallthru
      _
    %p124 = scmp.lt.s32.totalorder %s9, 2
    // Predicated region
    $region21: #{basic_conv_forward.1} parent=5 // pred_check
      %p125 = pneg %p124
    $region22: #{basic_conv_forward.1} parent=5 // pred_check_branch
      %127 = sbr.rel (%p125) target = $region24
    $region23: #{basic_conv_forward.1} parent=5 // pred_region
      // Predicated region
      $region25: #{basic_conv_forward.1} parent=23 // pred_check
        %p128 = pneg %p29
      $region26: #{basic_conv_forward.1} parent=23 // pred_check_branch
        %130 = sbr.rel (%p128) target = $region28
      $region27: #{basic_conv_forward.1} parent=23 // pred_region
        %p131 = scmp.lt.s32.totalorder %s9, 1
        %s132 = scalar_select %p131, %s9, 1
        %s133 = smul.addr %s132, 2
        %s134 = smul.addr %s133, 8
        %s135 = scalar_lea.vmem %s0, %s134
      $region28: #{basic_conv_forward.1} parent=23 // pred_fallthru
        _
    $region24: #{basic_conv_forward.1} parent=5 // pred_fallthru
      _
    %p136 = scmp.le.s32.totalorder 1, %s9
    %p137 = scmp.lt.s32.totalorder %s9, 3
    %p138 = pnand %p136, %p137
    %p139 = pneg %p138
    // Predicated region
    $region29: #{basic_conv_forward.1} parent=5 // pred_check
      _
    $region30: #{basic_conv_forward.1} parent=5 // pred_check_branch
      %141 = sbr.rel (%p138) target = $region32
    $region31: #{basic_conv_forward.1} parent=5 // pred_region
      %s142 = ssub.s32 %s9, 1
      %p143 = scmp.lt.s32.totalorder %s14, 1
      %s144 = scalar_select %p143, %s14, 1
      %s145 = smul.addr %s144, 2
      %s146 = smul.addr %s145, 8
      %s147 = scalar_lea.vmem %s0, %s146
      %p148 = pneg %p35
      %p149 = pneg %p32
      %p150 = pneg %p56
      %p151 = pneg %p53
      %p152 = pneg %p77
      %p153 = pneg %p74
      %p154 = pneg %p103
      %p155 = pneg %p100
      %p156 = scmp.lt.s32.totalorder %s14, 1
      %s157 = scalar_select %p156, %s14, 1
      %s158 = smul.addr %s157, 2
      %s159 = smul.addr %s158, 8
      %s160 = scalar_lea.vmem %s3, %s159
      %p161 = scmp.lt.s32.totalorder %s14, 1
      %s162 = scalar_select %p161, %s14, 1
      %s163 = smul.addr %s162, 2
      %s164 = smul.addr %s163, 8
      %s165 = scalar_lea.vmem %s0, %s164
      %p166 = scmp.lt.s32.totalorder %s14, 1
      %s167 = scalar_select %p166, %s14, 1
      %s168 = smul.addr %s167, 2
      %s169 = smul.addr %s168, 8
      %s170 = scalar_lea.vmem %s3, %s169
      %v171 = vld [vmem:[%s165] sm:$0xff]
      %v172 = vld [vmem:[%s165 + $0x8] sm:$0xff]
      %173 = vst [vmem:[#allocation2] sm:$0x1] 0.0
      %vm176 = vcmask 1040384
      %v177 = vrot.slane %v171, 7
      %v178 = vrot.slane %v172, 7
      %v179 = vsel %vm176, %v177, %v178
      %182 = vst [vmem:[#allocation2] sm:$0xfe] %v177
      %183 = vst [vmem:[#allocation2 + $0x18] sm:$0xff] %v179
      %184 = vst [vmem:[#allocation2 + $0x8] sm:$0xff] %v171
      %185 = vst [vmem:[#allocation2 + $0x20] sm:$0xff] %v172
      %186 = vst [vmem:[#allocation2 + $0x2f] sm:$0x1] 0.0
      %vm187 = vcmask 1046528
      %v188 = vrot.slane %v171, 1
      %v189 = vrot.slane %v172, 1
      %v190 = vsel %vm187, %v188, %v189
      %193 = vst [vmem:[#allocation2 + $0x10] sm:$0xff] %v190
      %194 = vst [vmem:[#allocation2 + $0x28] sm:$0x7f] %v189
      %v195 = vld [vmem:[#allocation2] sm:$0xff]
      %v196 = vld [vmem:[#allocation2 + $0x8] sm:$0xff]
      %v197 = vld [vmem:[#allocation2 + $0x10] sm:$0xff]
      %v198 = vld [vmem:[#allocation2 + $0x18] sm:$0xff]
      %v199 = vld [vmem:[#allocation2 + $0x20] sm:$0xff]
      %v200 = vld [vmem:[#allocation2 + $0x28] sm:$0xff]
      %v201 = vld [vmem:[%s1] sm:$0xff]
      %v202 = vld [vmem:[%s1 + $0x8] sm:$0xff]
      %v203 = vld [vmem:[%s1 + $0x10] sm:$0xff]
      %v204 = vld [vmem:[%s1 + $0x18] sm:$0xff]
      %v205 = vld [vmem:[%s1 + $0x20] sm:$0xff]
      %v206 = vld [vmem:[%s1 + $0x28] sm:$0xff]
      %v207 = vld [vmem:[%s1 + $0x30] sm:$0xff]
      %v208 = vld [vmem:[%s1 + $0x38] sm:$0xff]
      %v209 = vld [vmem:[%s1 + $0x40] sm:$0xff]
      %v210 = vld [vmem:[%s1 + $0x48] sm:$0xff]
      %v211 = vld [vmem:[%s1 + $0x50] sm:$0xff]
      %v212 = vld [vmem:[%s1 + $0x58] sm:$0xff]
      %v213 = vld [vmem:[%s1 + $0x60] sm:$0xff]
      %v214 = vld [vmem:[%s1 + $0x68] sm:$0xff]
      %v215 = vld [vmem:[%s1 + $0x70] sm:$0xff]
      %v216 = vld [vmem:[%s1 + $0x78] sm:$0xff]
      %v217 = vld [vmem:[%s1 + $0x80] sm:$0xff]
      %v218 = vld [vmem:[%s1 + $0x88] sm:$0xff]
      %v219 = vld [vmem:[%s1 + $0x90] sm:$0xff]
      %v220 = vld [vmem:[%s1 + $0x98] sm:$0xff]
      %v221 = vld [vmem:[%s1 + $0xa0] sm:$0xff]
      %v222 = vld [vmem:[%s1 + $0xa8] sm:$0xff]
      %v223 = vld [vmem:[%s1 + $0xb0] sm:$0xff]
      %v224 = vld [vmem:[%s1 + $0xb8] sm:$0xff]
      %v225 = vld [vmem:[%s1 + $0xc0] sm:$0xff]
      %v226 = vld [vmem:[%s1 + $0xc8] sm:$0xff]
      %v227 = vld [vmem:[%s1 + $0xd0] sm:$0xff]
      %v228 = vld [vmem:[%s1 + $0xd8] sm:$0xff]
      %v229 = vld [vmem:[%s1 + $0xe0] sm:$0xff]
      %v230 = vld [vmem:[%s1 + $0xe8] sm:$0xff]
      %v231 = vld [vmem:[%s1 + $0xf0] sm:$0xff]
      %v232 = vld [vmem:[%s1 + $0xf8] sm:$0xff]
      %v233 = vld [vmem:[%s1 + $0x100] sm:$0xff]
      %v234 = vld [vmem:[%s1 + $0x108] sm:$0xff]
      %v235 = vld [vmem:[%s1 + $0x110] sm:$0xff]
      %v236 = vld [vmem:[%s1 + $0x118] sm:$0xff]
      %v237 = vld [vmem:[%s1 + $0x120] sm:$0xff]
      %v238 = vld [vmem:[%s1 + $0x128] sm:$0xff]
      %v239 = vld [vmem:[%s1 + $0x130] sm:$0xff]
      %v240 = vld [vmem:[%s1 + $0x138] sm:$0xff]
      %v241 = vld [vmem:[%s1 + $0x140] sm:$0xff]
      %v242 = vld [vmem:[%s1 + $0x148] sm:$0xff]
      %v243 = vld [vmem:[%s1 + $0x150] sm:$0xff]
      %v244 = vld [vmem:[%s1 + $0x158] sm:$0xff]
      %v245 = vld [vmem:[%s1 + $0x160] sm:$0xff]
      %v246 = vld [vmem:[%s1 + $0x168] sm:$0xff]
      %v247 = vld [vmem:[%s1 + $0x170] sm:$0xff]
      %v248 = vld [vmem:[%s1 + $0x178] sm:$0xff]
      %v249 = vld [vmem:[%s2] sm:$0x1]
      %v251 = vlaneseq
      %v252 = vshrl.u32 %v251, 7
      %v253 = vsub.s32 0, %v252
      %v254 = vrot.slane %v249, %v253
      %256 = vmatprep.subr.mxu0 0.0
      %257 = vmatpush1.msra.mxu0 %v216
      %258 = vmatprep.subr.mxu0 0.0
      %259 = vmatpush1.msra.mxu0 %v215
      %260 = vmatprep.subr.mxu0 0.0
      %261 = vmatpush1.msra.mxu0 %v214
      %262 = vmatprep.subr.mxu0 0.0
      %263 = vmatpush1.msra.mxu0 %v213
      %264 = vmatprep.subr.mxu0 0.0
      %265 = vmatpush1.msra.mxu0 %v212
      %266 = vmatprep.subr.mxu0 0.0
      %267 = vmatpush1.msra.mxu0 %v211
      %268 = vmatprep.subr.mxu0 0.0
      %269 = vmatpush1.msra.mxu0 %v210
      %270 = vmatprep.subr.mxu0 0.0
      %271 = vmatpush1.msra.mxu0 %v209
      %272 = vmatprep.subr.mxu0 0.0
      %273 = vmatpush1.msra.mxu0 %v208
      %274 = vmatprep.subr.mxu0 0.0
      %275 = vmatpush1.msra.mxu0 %v207
      %276 = vmatprep.subr.mxu0 0.0
      %277 = vmatpush1.msra.mxu0 %v206
      %278 = vmatprep.subr.mxu0 0.0
      %279 = vmatpush1.msra.mxu0 %v205
      %280 = vmatprep.subr.mxu0 0.0
      %281 = vmatpush1.msra.mxu0 %v204
      %282 = vmatprep.subr.mxu0 0.0
      %283 = vmatpush1.msra.mxu0 %v203
      %284 = vmatprep.subr.mxu0 0.0
      %285 = vmatpush1.msra.mxu0 %v202
      %286 = vmatprep.subr.mxu0 0.0
      %287 = vmatpush1.msra.mxu0 %v201
      %288 = vmatprep.subr.mxu0 0.0
      %289 = vmatpush2.msra.mxu0 %v232
      %290 = vmatprep.subr.mxu0 0.0
      %291 = vmatpush2.msra.mxu0 %v231
      %292 = vmatprep.subr.mxu0 0.0
      %293 = vmatpush2.msra.mxu0 %v230
      %294 = vmatprep.subr.mxu0 0.0
      %295 = vmatpush2.msra.mxu0 %v229
      %296 = vmatprep.subr.mxu0 0.0
      %297 = vmatpush2.msra.mxu0 %v228
      %298 = vmatprep.subr.mxu0 0.0
      %299 = vmatpush2.msra.mxu0 %v227
      %300 = vmatprep.subr.mxu0 0.0
      %301 = vmatpush2.msra.mxu0 %v226
      %302 = vmatprep.subr.mxu0 0.0
      %303 = vmatpush2.msra.mxu0 %v225
      %304 = vmatprep.subr.mxu0 0.0
      %305 = vmatpush2.msra.mxu0 %v224
      %306 = vmatprep.subr.mxu0 0.0
      %307 = vmatpush2.msra.mxu0 %v223
      %308 = vmatprep.subr.mxu0 0.0
      %309 = vmatpush2.msra.mxu0 %v222
      %310 = vmatprep.subr.mxu0 0.0
      %311 = vmatpush2.msra.mxu0 %v221
      %312 = vmatprep.subr.mxu0 0.0
      %313 = vmatpush2.msra.mxu0 %v220
      %314 = vmatprep.subr.mxu0 0.0
      %315 = vmatpush2.msra.mxu0 %v219
      %316 = vmatprep.subr.mxu0 0.0
      %317 = vmatpush2.msra.mxu0 %v218
      %318 = vmatprep.subr.mxu0 0.0
      %319 = vmatpush2.msra.mxu0 %v217
      %320 = vmatprep.mubr.f32.mxu0 %v196
      %321 = vmatmul.mubr.f32.gmra.mxu0 %v195
      %v322 = vpop.f32.mrf.mxu0
      %v323 = vadd.f32 %v254, %v322
      %v324 = vpop.f32.mrf.mxu0
      %325 = vmatprep.mubr.f32.mxu0 %v199
      %326 = vmatmul.mubr.f32.gmra.mxu0 %v198
      %v327 = vpop.f32.mrf.mxu0
      %v328 = vadd.f32 %v254, %v327
      %v329 = vpop.f32.mrf.mxu0
      %330 = vdwg.mxu0
      %331 = vmatprep.subr.mxu0 0.0
      %332 = vmatpush1.msra.mxu0 %v248
      %333 = vmatprep.subr.mxu0 0.0
      %334 = vmatpush1.msra.mxu0 %v247
      %335 = vmatprep.subr.mxu0 0.0
      %336 = vmatpush1.msra.mxu0 %v246
      %337 = vmatprep.subr.mxu0 0.0
      %338 = vmatpush1.msra.mxu0 %v245
      %339 = vmatprep.subr.mxu0 0.0
      %340 = vmatpush1.msra.mxu0 %v244
      %341 = vmatprep.subr.mxu0 0.0
      %342 = vmatpush1.msra.mxu0 %v243
      %343 = vmatprep.subr.mxu0 0.0
      %344 = vmatpush1.msra.mxu0 %v242
      %345 = vmatprep.subr.mxu0 0.0
      %346 = vmatpush1.msra.mxu0 %v241
      %347 = vmatprep.subr.mxu0 0.0
      %348 = vmatpush1.msra.mxu0 %v240
      %349 = vmatprep.subr.mxu0 0.0
      %350 = vmatpush1.msra.mxu0 %v239
      %351 = vmatprep.subr.mxu0 0.0
      %352 = vmatpush1.msra.mxu0 %v238
      %353 = vmatprep.subr.mxu0 0.0
      %354 = vmatpush1.msra.mxu0 %v237
      %355 = vmatprep.subr.mxu0 0.0
      %356 = vmatpush1.msra.mxu0 %v236
      %357 = vmatprep.subr.mxu0 0.0
      %358 = vmatpush1.msra.mxu0 %v235
      %359 = vmatprep.subr.mxu0 0.0
      %360 = vmatpush1.msra.mxu0 %v234
      %361 = vmatprep.subr.mxu0 0.0
      %362 = vmatpush1.msra.mxu0 %v233
      %363 = vmatprep.subr.mxu0 0.0
      %364 = vmatpush2.msra.mxu0 0.0
      %365 = vmatprep.subr.mxu0 0.0
      %366 = vmatpush2.msra.mxu0 0.0
      %367 = vmatprep.subr.mxu0 0.0
      %368 = vmatpush2.msra.mxu0 0.0
      %369 = vmatprep.subr.mxu0 0.0
      %370 = vmatpush2.msra.mxu0 0.0
      %371 = vmatprep.subr.mxu0 0.0
      %372 = vmatpush2.msra.mxu0 0.0
      %373 = vmatprep.subr.mxu0 0.0
      %374 = vmatpush2.msra.mxu0 0.0
      %375 = vmatprep.subr.mxu0 0.0
      %376 = vmatpush2.msra.mxu0 0.0
      %377 = vmatprep.subr.mxu0 0.0
      %378 = vmatpush2.msra.mxu0 0.0
      %379 = vmatprep.subr.mxu0 0.0
      %380 = vmatpush2.msra.mxu0 0.0
      %381 = vmatprep.subr.mxu0 0.0
      %382 = vmatpush2.msra.mxu0 0.0
      %383 = vmatprep.subr.mxu0 0.0
      %384 = vmatpush2.msra.mxu0 0.0
      %385 = vmatprep.subr.mxu0 0.0
      %386 = vmatpush2.msra.mxu0 0.0
      %387 = vmatprep.subr.mxu0 0.0
      %388 = vmatpush2.msra.mxu0 0.0
      %389 = vmatprep.subr.mxu0 0.0
      %390 = vmatpush2.msra.mxu0 0.0
      %391 = vmatprep.subr.mxu0 0.0
      %392 = vmatpush2.msra.mxu0 0.0
      %393 = vmatprep.subr.mxu0 0.0
      %394 = vmatpush2.msra.mxu0 0.0
      %395 = vmatprep.mubr.f32.mxu0 0.0
      %396 = vmatmul.mubr.f32.gmra.mxu0 %v197
      %v397 = vpop.f32.mrf.mxu0
      %v398 = vadd.f32 %v323, %v397
      %v399 = vpop.f32.mrf.mxu0
      %400 = vmatprep.mubr.f32.mxu0 0.0
      %401 = vmatmul.mubr.f32.gmra.mxu0 %v200
      %v402 = vpop.f32.mrf.mxu0
      %v403 = vadd.f32 %v328, %v402
      %v404 = vpop.f32.mrf.mxu0
      %405 = vdwg.mxu0
      %v406 = vmax.f32 %v398, 0.0
      %v407 = vmax.f32 %v403, 0.0
      %408 = vst [vmem:[%s170] sm:$0xff] %v406
      %409 = vst [vmem:[%s170 + $0x8] sm:$0xff] %v407
      %p410 = scmp.lt.s32.totalorder %s14, 1
      %s411 = scalar_select %p410, %s14, 1
      %s412 = smul.addr %s411, 2
      %s413 = smul.addr %s412, 8
      %s414 = scalar_lea.vmem %s3, %s413
      // Predicated region
      $region33: #{basic_conv_forward.1} parent=31 // pred_check
        %p415 = pneg %p100
      $region34: #{basic_conv_forward.1} parent=31 // pred_check_branch
        %417 = sbr.rel (%p415) target = $region36
      $region35: #{basic_conv_forward.1} parent=31 // pred_region
        _
      $region36: #{basic_conv_forward.1} parent=31 // pred_fallthru
        _
    $region32: #{basic_conv_forward.1} parent=5 // pred_fallthru
      _
    %p418 = scmp.le.s32.totalorder 2, %s9
    // Predicated region
    $region37: #{basic_conv_forward.1} parent=5 // pred_check
      %p419 = pneg %p418
    $region38: #{basic_conv_forward.1} parent=5 // pred_check_branch
      %421 = sbr.rel (%p419) target = $region40
    $region39: #{basic_conv_forward.1} parent=5 // pred_region
      %s422 = ssub.s32 %s9, 2
      // Predicated region
      $region41: #{basic_conv_forward.1} parent=39 // pred_check
        %p423 = pneg %p106
      $region42: #{basic_conv_forward.1} parent=39 // pred_check_branch
        %425 = sbr.rel (%p423) target = $region44
      $region43: #{basic_conv_forward.1} parent=39 // pred_region
        %p426 = scmp.lt.s32.totalorder %s15, 1
        %s427 = scalar_select %p426, %s15, 1
        %s428 = smul.addr %s427, 2
        %s429 = smul.addr %s428, 8
        %s430 = scalar_lea.vmem %s3, %s429
      $region44: #{basic_conv_forward.1} parent=39 // pred_fallthru
        _
    $region40: #{basic_conv_forward.1} parent=5 // pred_fallthru
      _
  $region6: #{basic_conv_forward.1} parent=0 // loop_footer
    %s13 = sadd.s32 1, %s9
  $region7: #{basic_conv_forward.1} parent=0 // loop_footer_branch
    %8 = sbr.rel target = $region3
  $region8: #{basic_conv_forward.1} parent=0 // loop_exit
    _

</llo_original>
